<compile_context>
chip_gen: v7x
topology: tpu7x:2x2x1
jax: 0.10.0
libtpu: 0.0.40
codegen_flags: <defaults>
</compile_context>

<pallas_src>
import functools

import numpy as np
import jax
import jax.numpy as jnp
from jax.experimental import pallas as pl
from jax.experimental.pallas import tpu as pltpu

_LANE = 128
_SUBLANE_BF16 = 16                     # bf16 rows per packed sublane tile
_VMEM_BUDGET = 40 * 1024 * 1024        # conservative: fits v7x 64 MiB physical


def _round_up(x, m):
    return ((x + m - 1) // m) * m


def _pad_axis(x, axis, target):
    """Zero-pad `x` along `axis` up to `target` (no-op if already there)."""
    size = x.shape[axis]
    if size == target:
        return x
    pad = [(0, 0)] * x.ndim
    pad[axis] = (0, target - size)
    return jnp.pad(x, pad)


def _decoder_kernel(x_ref, w1_ref, b1_ref, w2_ref, b2_ref, o_ref):
    # Layer 1: x already holds concat(z, c), lane-padded -> single MXU pass.
    h = jnp.dot(x_ref[...], w1_ref[...], preferred_element_type=jnp.float32)
    # Bias + ReLU in f32 on the VPU (free filler under the MXU).
    h = jnp.maximum(h + b1_ref[...], 0.0)
    # Layer 2: MXU matmul, f32 accumulation; cast only on the final store.
    y = jnp.dot(h.astype(w2_ref.dtype), w2_ref[...],
                preferred_element_type=jnp.float32)
    o_ref[...] = (y + b2_ref[...]).astype(o_ref.dtype)


def prepare_decoder_params(w1, b1, w2, b2, *, compute_dtype=jnp.bfloat16):
    """One-time weight preparation (cast + lane padding). Cache the result.

    w1: (n_latents + n_cond, 512), b1: (512,), w2: (512, n_inputs), b2: (n_inputs,)
    Returns lane-padded (w1_p, b1_p, w2_p, b2_p) ready for `decoder_forward`.
    Zero padding keeps the math exact (padded hidden columns see zero bias and
    zero w2 rows).
    """
    d_in, hidden = w1.shape
    n_inputs = w2.shape[1]
    d_in_p = _round_up(d_in, _LANE)
    hid_p = _round_up(hidden, _LANE)
    n_p = _round_up(n_inputs, _LANE)

    w1_p = _pad_axis(_pad_axis(w1.astype(compute_dtype), 0, d_in_p), 1, hid_p)
    b1_p = _pad_axis(b1.astype(jnp.float32).reshape(1, hidden), 1, hid_p)
    w2_p = _pad_axis(_pad_axis(w2.astype(compute_dtype), 0, hid_p), 1, n_p)
    b2_p = _pad_axis(b2.astype(jnp.float32).reshape(1, n_inputs), 1, n_p)
    return w1_p, b1_p, w2_p, b2_p


def _select_batch_tile(B, d_in_p, n_p, in_itemsize, out_itemsize,
                       weight_bytes, block_b):
    """Batch tile: multiple of 16, >=2 tiles when worthwhile, VMEM-budgeted."""
    b16 = _round_up(max(B, 1), _SUBLANE_BF16)
    n_tiles = max(1, -(-b16 // block_b))
    if n_tiles == 1 and b16 >= 64:
        n_tiles = 2                     # let both v7x TensorCores get a tile
    tb = _round_up(-(-b16 // n_tiles), _SUBLANE_BF16)
    if tb > 256:
        tb = _round_up(tb, 256)         # full-height MXU passes for big tiles
    # VMEM budget: activation & output tiles double-buffered, weights single.
    per_row = 2 * d_in_p * in_itemsize + 2 * n_p * out_itemsize
    max_rows = (_VMEM_BUDGET - weight_bytes) // per_row
    max_rows = max(_SUBLANE_BF16, (max_rows // _SUBLANE_BF16) * _SUBLANE_BF16)
    tb = max(_SUBLANE_BF16, min(tb, block_b, max_rows))
    return tb


@functools.partial(jax.jit, static_argnames=("n_inputs", "out_dtype", "block_b"))
def decoder_forward(z, c, w1_p, b1_p, w2_p, b2_p, *, n_inputs,
                    out_dtype=jnp.float32, block_b=512):
    """z: (B, n_latents), c: (B, n_cond) -> (B, n_inputs)."""
    B = z.shape[0]
    d_in = z.shape[1] + c.shape[1]
    d_in_p, hid_p = w1_p.shape
    n_p = w2_p.shape[1]
    assert w2_p.shape[0] == hid_p and b1_p.shape == (1, hid_p)
    assert b2_p.shape == (1, n_p) and d_in <= d_in_p and n_inputs <= n_p

    compute_dtype = w1_p.dtype
    in_itemsize = np.dtype(compute_dtype).itemsize
    out_itemsize = np.dtype(out_dtype).itemsize

    # Concat once in the wrapper (tiny (B, d_in) array), cast, lane-pad.
    x = jnp.concatenate((z, c), axis=1).astype(compute_dtype)
    x = _pad_axis(x, 1, d_in_p)

    weight_bytes = (w1_p.size * w1_p.dtype.itemsize
                    + b1_p.size * b1_p.dtype.itemsize
                    + w2_p.size * w2_p.dtype.itemsize
                    + b2_p.size * b2_p.dtype.itemsize)
    tb = _select_batch_tile(B, d_in_p, n_p, in_itemsize, out_itemsize,
                            weight_bytes, block_b)
    b_pad = _round_up(B, tb)
    x = _pad_axis(x, 0, b_pad)
    n_tiles = b_pad // tb

    per_row = 2 * d_in_p * in_itemsize + 2 * n_p * out_itemsize
    vmem_limit = int(min(64 << 20,
                         max(32 << 20, weight_bytes + tb * per_row + (4 << 20))))

    resident = pl.Buffered(1)           # grid-invariant weights: single buffer
    flops = 2 * b_pad * d_in_p * hid_p + 2 * b_pad * hid_p * n_p
    bytes_accessed = (x.size * in_itemsize + weight_bytes
                      + b_pad * n_p * out_itemsize)

    out = pl.pallas_call(
        _decoder_kernel,
        out_shape=jax.ShapeDtypeStruct((b_pad, n_p), out_dtype),
        grid_spec=pltpu.PrefetchScalarGridSpec(
            num_scalar_prefetch=0,
            grid=(n_tiles,),
            in_specs=[
                pl.BlockSpec((tb, d_in_p), lambda i: (i, 0)),    # x tile
                pl.BlockSpec((d_in_p, hid_p), lambda i: (0, 0),
                             pipeline_mode=resident),            # W1
                pl.BlockSpec((1, hid_p), lambda i: (0, 0),
                             pipeline_mode=resident),            # b1
                pl.BlockSpec((hid_p, n_p), lambda i: (0, 0),
                             pipeline_mode=resident),            # W2
                pl.BlockSpec((1, n_p), lambda i: (0, 0),
                             pipeline_mode=resident),            # b2
            ],
            out_specs=pl.BlockSpec((tb, n_p), lambda i: (i, 0)),
        ),
        compiler_params=pltpu.CompilerParams(
            dimension_semantics=("parallel",),
            vmem_limit_bytes=vmem_limit),
        cost_estimate=pl.CostEstimate(
            flops=int(flops), transcendentals=0,
            bytes_accessed=int(bytes_accessed)),
    )(x, w1_p, b1_p, w2_p, b2_p)

    # Strip batch / lane padding (cheap static slice in the wrapper).
    return out[:B, :n_inputs]


def init_decoder_params(key, n_inputs, n_latents, n_cond, hidden=512,
                        dtype=jnp.float32):
    """Deterministic PyTorch-style init: U(-1/sqrt(fan_in), 1/sqrt(fan_in))."""
    d_in = n_latents + n_cond
    k1, k2, k3, k4 = jax.random.split(key, 4)
    bound1 = 1.0 / jnp.sqrt(d_in)
    bound2 = 1.0 / jnp.sqrt(hidden)
    # Stored as (in, out) — transpose of torch's (out, in) weight.
    w1 = jax.random.uniform(k1, (d_in, hidden), dtype, -bound1, bound1)
    b1 = jax.random.uniform(k2, (hidden,), dtype, -bound1, bound1)
    w2 = jax.random.uniform(k3, (hidden, n_inputs), dtype, -bound2, bound2)
    b2 = jax.random.uniform(k4, (n_inputs,), dtype, -bound2, bound2)
    return w1, b1, w2, b2


if __name__ == "__main__":
    # Small, module-consistent shapes.
    B, n_latents, n_cond, n_inputs, hidden = 8, 32, 16, 64, 512

    key = jax.random.PRNGKey(0)
    kz, kc, kp = jax.random.split(key, 3)
    z = jax.random.normal(kz, (B, n_latents), jnp.float32)
    c = jax.random.normal(kc, (B, n_cond), jnp.float32)
    w1, b1, w2, b2 = init_decoder_params(kp, n_inputs, n_latents, n_cond, hidden)

    # One-time weight prep (bf16 cast + lane padding) — cache and reuse.
    w1_p, b1_p, w2_p, b2_p = prepare_decoder_params(w1, b1, w2, b2)

    out = decoder_forward(z, c, w1_p, b1_p, w2_p, b2_p, n_inputs=n_inputs)
    out = jax.block_until_ready(out)
    assert out.shape == (B, n_inputs)

    # Reference 1: bf16-consistent plain-JAX path (tight check of kernel math).
    x = jnp.concatenate((z, c), axis=1)
    xb = x.astype(jnp.bfloat16)
    h_ref = jnp.maximum(
        jnp.dot(xb, w1.astype(jnp.bfloat16),
                preferred_element_type=jnp.float32) + b1, 0.0)
    ref_bf16 = jnp.dot(h_ref.astype(jnp.bfloat16), w2.astype(jnp.bfloat16),
                       preferred_element_type=jnp.float32) + b2
    assert jnp.allclose(out, ref_bf16, atol=1e-3, rtol=1e-3), float(
        jnp.max(jnp.abs(out - ref_bf16)))

    # Reference 2: full-f32 math (loose tolerance — bf16 matmul rounding).
    ref_f32 = jnp.maximum(x @ w1 + b1, 0.0) @ w2 + b2
    assert jnp.allclose(out, ref_f32, atol=3e-2, rtol=3e-2), float(
        jnp.max(jnp.abs(out - ref_f32)))

    print("KERNEL_OK")
</pallas_src>

<mosaic_0001>
module attributes {stable_mosaic.version = 11 : i64} {
  func.func @_decoder_kernel(%arg0: i32, %arg1: memref<16x128xbf16, #tpu.memory_space<vmem>>, %arg2: memref<128x512xbf16, #tpu.memory_space<vmem>>, %arg3: memref<1x512xf32, #tpu.memory_space<vmem>>, %arg4: memref<512x128xbf16, #tpu.memory_space<vmem>>, %arg5: memref<1x128xf32, #tpu.memory_space<vmem>>, %arg6: memref<16x128xf32, #tpu.memory_space<vmem>>) attributes {dimension_semantics = [#tpu.dimension_semantics<parallel>], iteration_bounds = array<i64: 1>, scalar_prefetch = 0 : i64, scratch_operands = 0 : i64, tpu.core_type = #tpu.core_type<tc>, window_params = [{transform_indices = @transform_0, window_bounds = array<i64: 16, 128>}, {pipeline_mode = #tpu.pipeline_mode<synchronous>, transform_indices = @transform_1, window_bounds = array<i64: 128, 512>}, {pipeline_mode = #tpu.pipeline_mode<synchronous>, transform_indices = @transform_2, window_bounds = array<i64: 1, 512>}, {pipeline_mode = #tpu.pipeline_mode<synchronous>, transform_indices = @transform_3, window_bounds = array<i64: 512, 128>}, {pipeline_mode = #tpu.pipeline_mode<synchronous>, transform_indices = @transform_4, window_bounds = array<i64: 1, 128>}, {transform_indices = @transform_5, window_bounds = array<i64: 16, 128>}]} {
    %c0 = arith.constant 0 : index
    %c0_0 = arith.constant 0 : index
    %0 = vector.load %arg1[%c0, %c0_0] : memref<16x128xbf16, #tpu.memory_space<vmem>>, vector<16x128xbf16>
    %c0_1 = arith.constant 0 : index
    %c0_2 = arith.constant 0 : index
    %1 = vector.load %arg2[%c0_1, %c0_2] : memref<128x512xbf16, #tpu.memory_space<vmem>>, vector<128x512xbf16>
    %cst = arith.constant dense<0.000000e+00> : vector<16x512xf32>
    %2 = tpu.matmul %0, %1, %cst {dimension_numbers = #tpu.dot_dimension_numbers<[1], [0], [0], [1], [0, 0, 1, 1], [], []>} : vector<16x128xbf16>, vector<128x512xbf16>, vector<16x512xf32> -> vector<16x512xf32>
    %c0_3 = arith.constant 0 : index
    %c0_4 = arith.constant 0 : index
    %3 = vector.load %arg3[%c0_3, %c0_4] : memref<1x512xf32, #tpu.memory_space<vmem>>, vector<1x512xf32>
    %4 = vector.broadcast %3 : vector<1x512xf32> to vector<16x512xf32>
    %5 = arith.addf %2, %4 : vector<16x512xf32>
    %cst_5 = arith.constant 0.000000e+00 : f32
    %6 = vector.broadcast %cst_5 : f32 to vector<16x512xf32>
    %7 = arith.maximumf %5, %6 : vector<16x512xf32>
    %8 = arith.truncf %7 : vector<16x512xf32> to vector<16x512xbf16>
    %c0_6 = arith.constant 0 : index
    %c0_7 = arith.constant 0 : index
    %9 = vector.load %arg4[%c0_6, %c0_7] : memref<512x128xbf16, #tpu.memory_space<vmem>>, vector<512x128xbf16>
    %cst_8 = arith.constant dense<0.000000e+00> : vector<16x128xf32>
    %10 = tpu.matmul %8, %9, %cst_8 {dimension_numbers = #tpu.dot_dimension_numbers<[1], [0], [0], [1], [0, 0, 1, 1], [], []>} : vector<16x512xbf16>, vector<512x128xbf16>, vector<16x128xf32> -> vector<16x128xf32>
    %c0_9 = arith.constant 0 : index
    %c0_10 = arith.constant 0 : index
    %11 = vector.load %arg5[%c0_9, %c0_10] : memref<1x128xf32, #tpu.memory_space<vmem>>, vector<1x128xf32>
    %12 = vector.broadcast %11 : vector<1x128xf32> to vector<16x128xf32>
    %13 = arith.addf %10, %12 : vector<16x128xf32>
    %c0_11 = arith.constant 0 : index
    %c0_12 = arith.constant 0 : index
    %14 = vector.load %arg6[%c0_11, %c0_12] : memref<16x128xf32, #tpu.memory_space<vmem>>, vector<16x128xf32>
    tpu.vector_store %arg6[%c0_11, %c0_12], %13 {strides = array<i32>} : memref<16x128xf32, #tpu.memory_space<vmem>>, vector<16x128xf32>,
    return
  }
  func.func @transform_0(%arg0: i32) -> (i32, i32) {
    %c0_i32 = arith.constant 0 : i32
    %c0_i32_0 = arith.constant 0 : i32
    return %arg0, %c0_i32 : i32, i32
  }
  func.func @transform_1(%arg0: i32) -> (i32, i32) {
    %c0_i32 = arith.constant 0 : i32
    %c0_i32_0 = arith.constant 0 : i32
    %c0_i32_1 = arith.constant 0 : i32
    return %c0_i32, %c0_i32_0 : i32, i32
  }
  func.func @transform_2(%arg0: i32) -> (i32, i32) {
    %c0_i32 = arith.constant 0 : i32
    %c0_i32_0 = arith.constant 0 : i32
    %c0_i32_1 = arith.constant 0 : i32
    return %c0_i32, %c0_i32_0 : i32, i32
  }
  func.func @transform_3(%arg0: i32) -> (i32, i32) {
    %c0_i32 = arith.constant 0 : i32
    %c0_i32_0 = arith.constant 0 : i32
    %c0_i32_1 = arith.constant 0 : i32
    return %c0_i32, %c0_i32_0 : i32, i32
  }
  func.func @transform_4(%arg0: i32) -> (i32, i32) {
    %c0_i32 = arith.constant 0 : i32
    %c0_i32_0 = arith.constant 0 : i32
    %c0_i32_1 = arith.constant 0 : i32
    return %c0_i32, %c0_i32_0 : i32, i32
  }
  func.func @transform_5(%arg0: i32) -> (i32, i32) {
    %c0_i32 = arith.constant 0 : i32
    %c0_i32_0 = arith.constant 0 : i32
    return %arg0, %c0_i32 : i32, i32
  }
}

</mosaic_0001>

<llo_original>
// kernel: decoder_forward.1
$region0: #{decoder_forward.1}
  #allocation0 [shape = 'u32[]', space=smem, size = 0x4, offset = 0x4, fixed_abs, tag = 'smem constant byte address 0x4 - core index']
  #allocation1 [shape = 'u32[144,128]{1,0:T(1,128)}', space=vmem, size = 0x12000, scoped, tag = 'internal scratch']
  %s0 = inlined_call_operand.vmem [shape: bf16[16,128], index: 0, kind: input, shape index: {}]
  %s1 = inlined_call_operand.hbm [shape: bf16[128,512], index: 1, kind: input, shape index: {}]
  %s2 = inlined_call_operand.vmem [shape: f32[1,512], index: 2, kind: input, shape index: {}]
  %s3 = inlined_call_operand.hbm [shape: bf16[512,128], index: 3, kind: input, shape index: {}]
  %s4 = inlined_call_operand.vmem [shape: f32[1,128], index: 4, kind: input, shape index: {}]
  %s5 = inlined_call_operand.vmem [shape: f32[16,128], index: 5, kind: output, shape index: {}]
  %s6 = sld [smem:[#allocation0]]
  $region38: #{decoder_forward.1} parent=0
    _
  %s8 = ssub.s32 1, %s6
  %s9 = scalar_select 0, %s8, %s6
  $region1: #{decoder_forward.1} parent=0
    #allocation2 [shape = 'u8[131072]{0}', space=vmem, size = 0x20000, scoped, tag = 'input window, operand 1, single buffered']
    #allocation3 [shape = 's32[1]{0}', space=sflag, size = 0x4, scoped, tag = 'scoped memory for decoder_forward.1']
    #allocation4 [shape = 'u8[131072]{0}', space=vmem, size = 0x20000, scoped, tag = 'input window, operand 3, single buffered']
    #allocation5 [shape = 's32[1]{0}', space=sflag, size = 0x4, scoped, tag = 'scoped memory for decoder_forward.1']
    %10 = vsyncpa [#allocation3], 0
    %11 = vsyncpa [#allocation5], 0
    // Predicated region
    $region2: #{decoder_forward.1} parent=1 // pred_check
      _
    $region3: #{decoder_forward.1} parent=1 // pred_check_branch
      %13 = sbr.rel (0) target = $region5
    $region4: #{decoder_forward.1} parent=1 // pred_region
      _
    $region5: #{decoder_forward.1} parent=1 // pred_fallthru
      _
    // Predicated region
    $region6: #{decoder_forward.1} parent=1 // pred_check
      _
    $region7: #{decoder_forward.1} parent=1 // pred_check_branch
      %15 = sbr.rel (0) target = $region9
    $region8: #{decoder_forward.1} parent=1 // pred_region
      %s17 = ssub.s32 4096, 4096
      %18 = vsyncadd [#allocation3], %s17
      %s19 = sshll.u32 [#allocation2], 4
      %s20 = int_to_ptr.vmem [resolvable:$true] %s19
      %25 = dma.hbm_to_vmem [thread:$0]  %s1, 4096, %s20, [#allocation3], 256, 256, 16
    $region9: #{decoder_forward.1} parent=1 // pred_fallthru
      _
    // Predicated region
    $region10: #{decoder_forward.1} parent=1 // pred_check
      _
    $region11: #{decoder_forward.1} parent=1 // pred_check_branch
      %27 = sbr.rel (0) target = $region13
    $region12: #{decoder_forward.1} parent=1 // pred_region
      _
    $region13: #{decoder_forward.1} parent=1 // pred_fallthru
      _
    // Predicated region
    $region14: #{decoder_forward.1} parent=1 // pred_check
      _
    $region15: #{decoder_forward.1} parent=1 // pred_check_branch
      %29 = sbr.rel (0) target = $region17
    $region16: #{decoder_forward.1} parent=1 // pred_region
      %s31 = ssub.s32 4096, 4096
      %32 = vsyncadd [#allocation5], %s31
      %s33 = sshll.u32 [#allocation4], 4
      %s34 = int_to_ptr.vmem [resolvable:$true] %s33
      %39 = dma.hbm_to_vmem [thread:$0]  %s3, 4096, %s34, [#allocation5], 64, 64, 4
    $region17: #{decoder_forward.1} parent=1 // pred_fallthru
      _
    // Predicated region
    $region18: #{decoder_forward.1} parent=1 // pred_check
      _
    $region19: #{decoder_forward.1} parent=1 // pred_check_branch
      %41 = sbr.rel (0) target = $region21
    $region20: #{decoder_forward.1} parent=1 // pred_region
      _
    $region21: #{decoder_forward.1} parent=1 // pred_fallthru
      _
    // Predicated region
    $region22: #{decoder_forward.1} parent=1 // pred_check
      _
    $region23: #{decoder_forward.1} parent=1 // pred_check_branch
      %43 = sbr.rel (0) target = $region25
    $region24: #{decoder_forward.1} parent=1 // pred_region
      %44 = dma.done [#allocation3], 4096
    $region25: #{decoder_forward.1} parent=1 // pred_fallthru
      _
    // Predicated region
    $region26: #{decoder_forward.1} parent=1 // pred_check
      _
    $region27: #{decoder_forward.1} parent=1 // pred_check_branch
      %46 = sbr.rel (0) target = $region29
    $region28: #{decoder_forward.1} parent=1 // pred_region
      %47 = dma.done [#allocation5], 4096
    $region29: #{decoder_forward.1} parent=1 // pred_fallthru
      _
    %v49 = vld [vmem:[%s0] sm:$0xf]
    %v50 = vld [vmem:[%s0 + $0x4] sm:$0xf]
    %v51 = vld [vmem:[#allocation2] sm:$0xff]
    %v52 = vld [vmem:[#allocation2 + $0x8] sm:$0xff]
    %v53 = vld [vmem:[#allocation2 + $0x10] sm:$0xff]
    %v54 = vld [vmem:[#allocation2 + $0x18] sm:$0xff]
    %v55 = vld [vmem:[#allocation2 + $0x20] sm:$0xff]
    %v56 = vld [vmem:[#allocation2 + $0x28] sm:$0xff]
    %v57 = vld [vmem:[#allocation2 + $0x30] sm:$0xff]
    %v58 = vld [vmem:[#allocation2 + $0x38] sm:$0xff]
    %v59 = vld [vmem:[#allocation2 + $0x40] sm:$0xff]
    %v60 = vld [vmem:[#allocation2 + $0x48] sm:$0xff]
    %v61 = vld [vmem:[#allocation2 + $0x50] sm:$0xff]
    %v62 = vld [vmem:[#allocation2 + $0x58] sm:$0xff]
    %v63 = vld [vmem:[#allocation2 + $0x60] sm:$0xff]
    %v64 = vld [vmem:[#allocation2 + $0x68] sm:$0xff]
    %v65 = vld [vmem:[#allocation2 + $0x70] sm:$0xff]
    %v66 = vld [vmem:[#allocation2 + $0x78] sm:$0xff]
    %v67 = vld [vmem:[#allocation2 + $0x80] sm:$0xff]
    %v68 = vld [vmem:[#allocation2 + $0x88] sm:$0xff]
    %v69 = vld [vmem:[#allocation2 + $0x90] sm:$0xff]
    %v70 = vld [vmem:[#allocation2 + $0x98] sm:$0xff]
    %v71 = vld [vmem:[#allocation2 + $0xa0] sm:$0xff]
    %v72 = vld [vmem:[#allocation2 + $0xa8] sm:$0xff]
    %v73 = vld [vmem:[#allocation2 + $0xb0] sm:$0xff]
    %v74 = vld [vmem:[#allocation2 + $0xb8] sm:$0xff]
    %v75 = vld [vmem:[#allocation2 + $0xc0] sm:$0xff]
    %v76 = vld [vmem:[#allocation2 + $0xc8] sm:$0xff]
    %v77 = vld [vmem:[#allocation2 + $0xd0] sm:$0xff]
    %v78 = vld [vmem:[#allocation2 + $0xd8] sm:$0xff]
    %v79 = vld [vmem:[#allocation2 + $0xe0] sm:$0xff]
    %v80 = vld [vmem:[#allocation2 + $0xe8] sm:$0xff]
    %v81 = vld [vmem:[#allocation2 + $0xf0] sm:$0xff]
    %v82 = vld [vmem:[#allocation2 + $0xf8] sm:$0xff]
    %v83 = vld [vmem:[%s2] sm:$0xf]
    %v85 = vlaneseq
    %v86 = vshrl.u32 %v85, 7
    %v87 = vsub.s32 0, %v86
    %v88 = vrot.slane %v83, %v87
    %v89 = vlaneseq
    %v90 = vshrl.u32 %v89, 7
    %v91 = vsub.s32 1, %v90
    %v92 = vrot.slane %v83, %v91
    %v93 = vlaneseq
    %v94 = vshrl.u32 %v93, 7
    %v95 = vsub.s32 2, %v94
    %v96 = vrot.slane %v83, %v95
    %v97 = vlaneseq
    %v98 = vshrl.u32 %v97, 7
    %v99 = vsub.s32 3, %v98
    %v100 = vrot.slane %v83, %v99
    %v107 = vunpack.c.l.b16 %v49
    %v108 = vunpack.c.l.b16 %v50
    %v109 = vpack.c.b16 %v108, %v107
    %v143 = vunpack.c.l.b16 %v51
    %v144 = vunpack.c.h.b16 %v51
    %v145 = vunpack.c.l.b16 %v52
    %v146 = vunpack.c.h.b16 %v52
    %v147 = vunpack.c.l.b16 %v53
    %v148 = vunpack.c.h.b16 %v53
    %v149 = vunpack.c.l.b16 %v54
    %v150 = vunpack.c.h.b16 %v54
    %v151 = vunpack.c.l.b16 %v55
    %v152 = vunpack.c.h.b16 %v55
    %v153 = vunpack.c.l.b16 %v56
    %v154 = vunpack.c.h.b16 %v56
    %v155 = vunpack.c.l.b16 %v57
    %v156 = vunpack.c.h.b16 %v57
    %v157 = vunpack.c.l.b16 %v58
    %v158 = vunpack.c.h.b16 %v58
    %v159 = vunpack.c.l.b16 %v59
    %v160 = vunpack.c.h.b16 %v59
    %v161 = vunpack.c.l.b16 %v60
    %v162 = vunpack.c.h.b16 %v60
    %v163 = vunpack.c.l.b16 %v61
    %v164 = vunpack.c.h.b16 %v61
    %v165 = vunpack.c.l.b16 %v62
    %v166 = vunpack.c.h.b16 %v62
    %v167 = vunpack.c.l.b16 %v63
    %v168 = vunpack.c.h.b16 %v63
    %v169 = vunpack.c.l.b16 %v64
    %v170 = vunpack.c.h.b16 %v64
    %v171 = vunpack.c.l.b16 %v65
    %v172 = vunpack.c.h.b16 %v65
    %v173 = vunpack.c.l.b16 %v66
    %v174 = vunpack.c.h.b16 %v66
    %v175 = vunpack.c.l.b16 %v67
    %v176 = vunpack.c.h.b16 %v67
    %v177 = vunpack.c.l.b16 %v68
    %v178 = vunpack.c.h.b16 %v68
    %v179 = vunpack.c.l.b16 %v69
    %v180 = vunpack.c.h.b16 %v69
    %v181 = vunpack.c.l.b16 %v70
    %v182 = vunpack.c.h.b16 %v70
    %v183 = vunpack.c.l.b16 %v71
    %v184 = vunpack.c.h.b16 %v71
    %v185 = vunpack.c.l.b16 %v72
    %v186 = vunpack.c.h.b16 %v72
    %v187 = vunpack.c.l.b16 %v73
    %v188 = vunpack.c.h.b16 %v73
    %v189 = vunpack.c.l.b16 %v74
    %v190 = vunpack.c.h.b16 %v74
    %v191 = vunpack.c.l.b16 %v75
    %v192 = vunpack.c.h.b16 %v75
    %v193 = vunpack.c.l.b16 %v76
    %v194 = vunpack.c.h.b16 %v76
    %v195 = vunpack.c.l.b16 %v77
    %v196 = vunpack.c.h.b16 %v77
    %v197 = vunpack.c.l.b16 %v78
    %v198 = vunpack.c.h.b16 %v78
    %v199 = vunpack.c.l.b16 %v79
    %v200 = vunpack.c.h.b16 %v79
    %v201 = vunpack.c.l.b16 %v80
    %v202 = vunpack.c.h.b16 %v80
    %v203 = vunpack.c.l.b16 %v81
    %v204 = vunpack.c.h.b16 %v81
    %v205 = vunpack.c.l.b16 %v82
    %v206 = vunpack.c.h.b16 %v82
    %v207 = vpack.c.b16 %v147, %v143
    %v208 = vpack.c.b16 %v148, %v144
    %v209 = vpack.c.b16 %v149, %v145
    %v210 = vpack.c.b16 %v150, %v146
    %v211 = vpack.c.b16 %v155, %v151
    %v212 = vpack.c.b16 %v156, %v152
    %v213 = vpack.c.b16 %v157, %v153
    %v214 = vpack.c.b16 %v158, %v154
    %v215 = vpack.c.b16 %v163, %v159
    %v216 = vpack.c.b16 %v164, %v160
    %v217 = vpack.c.b16 %v165, %v161
    %v218 = vpack.c.b16 %v166, %v162
    %v219 = vpack.c.b16 %v171, %v167
    %v220 = vpack.c.b16 %v172, %v168
    %v221 = vpack.c.b16 %v173, %v169
    %v222 = vpack.c.b16 %v174, %v170
    %v223 = vpack.c.b16 %v179, %v175
    %v224 = vpack.c.b16 %v180, %v176
    %v225 = vpack.c.b16 %v181, %v177
    %v226 = vpack.c.b16 %v182, %v178
    %v227 = vpack.c.b16 %v187, %v183
    %v228 = vpack.c.b16 %v188, %v184
    %v229 = vpack.c.b16 %v189, %v185
    %v230 = vpack.c.b16 %v190, %v186
    %v231 = vpack.c.b16 %v195, %v191
    %v232 = vpack.c.b16 %v196, %v192
    %v233 = vpack.c.b16 %v197, %v193
    %v234 = vpack.c.b16 %v198, %v194
    %v235 = vpack.c.b16 %v203, %v199
    %v236 = vpack.c.b16 %v204, %v200
    %v237 = vpack.c.b16 %v205, %v201
    %v238 = vpack.c.b16 %v206, %v202
    %271 = vmatprep.subr.bf16.mxu0 %v208
    %272 = vmatpush1.bf16.msra.mxu0 %v207
    %273 = vmatprep.subr.bf16.mxu0 %v212
    %274 = vmatpush1.bf16.msra.mxu0 %v211
    %275 = vmatprep.subr.bf16.mxu0 %v216
    %276 = vmatpush1.bf16.msra.mxu0 %v215
    %277 = vmatprep.subr.bf16.mxu0 %v220
    %278 = vmatpush1.bf16.msra.mxu0 %v219
    %279 = vmatprep.subr.bf16.mxu0 %v224
    %280 = vmatpush1.bf16.msra.mxu0 %v223
    %281 = vmatprep.subr.bf16.mxu0 %v228
    %282 = vmatpush1.bf16.msra.mxu0 %v227
    %283 = vmatprep.subr.bf16.mxu0 %v232
    %284 = vmatpush1.bf16.msra.mxu0 %v231
    %285 = vmatprep.subr.bf16.mxu0 %v236
    %286 = vmatpush1.bf16.msra.mxu0 %v235
    %287 = vmatprep.subr.bf16.mxu0 0
    %288 = vmatpush1.bf16.msra.mxu0 0
    %289 = vmatprep.subr.bf16.mxu0 0
    %290 = vmatpush1.bf16.msra.mxu0 0
    %291 = vmatprep.subr.bf16.mxu0 0
    %292 = vmatpush1.bf16.msra.mxu0 0
    %293 = vmatprep.subr.bf16.mxu0 0
    %294 = vmatpush1.bf16.msra.mxu0 0
    %295 = vmatprep.subr.bf16.mxu0 0
    %296 = vmatpush1.bf16.msra.mxu0 0
    %297 = vmatprep.subr.bf16.mxu0 0
    %298 = vmatpush1.bf16.msra.mxu0 0
    %299 = vmatprep.subr.bf16.mxu0 0
    %300 = vmatpush1.bf16.msra.mxu0 0
    %301 = vmatprep.subr.bf16.mxu0 0
    %302 = vmatpush1.bf16.msra.mxu0 0
    %303 = vmatprep.mubr.bf16.mxu0 0
    %304 = vmatmul.mubr.bf16.gmra.mrb[0].mxu0 %v109
    %v305 = vpop.f32.mrb[0].mxu0
    %v306 = vadd.f32 %v88, %v305
    %v307 = vpop.f32.mrb[0].mxu0
    %v308 = vadd.f32 %v92, %v307
    %v309 = vpop.f32.mrb[0].mxu0
    %v310 = vadd.f32 %v88, %v309
    %v311 = vpop.f32.mrb[0].mxu0
    %v312 = vadd.f32 %v92, %v311
    %313 = vdwg.mxu0
    %314 = vmatprep.subr.bf16.mxu0 %v210
    %315 = vmatpush1.bf16.msra.mxu0 %v209
    %316 = vmatprep.subr.bf16.mxu0 %v214
    %317 = vmatpush1.bf16.msra.mxu0 %v213
    %318 = vmatprep.subr.bf16.mxu0 %v218
    %319 = vmatpush1.bf16.msra.mxu0 %v217
    %320 = vmatprep.subr.bf16.mxu0 %v222
    %321 = vmatpush1.bf16.msra.mxu0 %v221
    %322 = vmatprep.subr.bf16.mxu0 %v226
    %323 = vmatpush1.bf16.msra.mxu0 %v225
    %324 = vmatprep.subr.bf16.mxu0 %v230
    %325 = vmatpush1.bf16.msra.mxu0 %v229
    %326 = vmatprep.subr.bf16.mxu0 %v234
    %327 = vmatpush1.bf16.msra.mxu0 %v233
    %328 = vmatprep.subr.bf16.mxu0 %v238
    %329 = vmatpush1.bf16.msra.mxu0 %v237
    %330 = vmatprep.subr.bf16.mxu0 0
    %331 = vmatpush1.bf16.msra.mxu0 0
    %332 = vmatprep.subr.bf16.mxu0 0
    %333 = vmatpush1.bf16.msra.mxu0 0
    %334 = vmatprep.subr.bf16.mxu0 0
    %335 = vmatpush1.bf16.msra.mxu0 0
    %336 = vmatprep.subr.bf16.mxu0 0
    %337 = vmatpush1.bf16.msra.mxu0 0
    %338 = vmatprep.subr.bf16.mxu0 0
    %339 = vmatpush1.bf16.msra.mxu0 0
    %340 = vmatprep.subr.bf16.mxu0 0
    %341 = vmatpush1.bf16.msra.mxu0 0
    %342 = vmatprep.subr.bf16.mxu0 0
    %343 = vmatpush1.bf16.msra.mxu0 0
    %344 = vmatprep.subr.bf16.mxu0 0
    %345 = vmatpush1.bf16.msra.mxu0 0
    %346 = vmatprep.mubr.bf16.mxu0 0
    %347 = vmatmul.mubr.bf16.gmra.mrb[0].mxu0 %v109
    %v348 = vpop.f32.mrb[0].mxu0
    %v349 = vadd.f32 %v96, %v348
    %v350 = vpop.f32.mrb[0].mxu0
    %v351 = vadd.f32 %v100, %v350
    %v352 = vpop.f32.mrb[0].mxu0
    %v353 = vadd.f32 %v96, %v352
    %v354 = vpop.f32.mrb[0].mxu0
    %v355 = vadd.f32 %v100, %v354
    %356 = vdwg.mxu0
    %v357 = vmax.f32 %v306, 0.0
    %v358 = vmax.f32 %v308, 0.0
    %v359 = vmax.f32 %v349, 0.0
    %v360 = vmax.f32 %v351, 0.0
    %v361 = vmax.f32 %v310, 0.0
    %v362 = vmax.f32 %v312, 0.0
    %v363 = vmax.f32 %v353, 0.0
    %v364 = vmax.f32 %v355, 0.0
    %v365 = vpack.c.bf16 %v361, %v357
    %v366 = vpack.c.bf16 %v362, %v358
    %v367 = vpack.c.bf16 %v363, %v359
    %v368 = vpack.c.bf16 %v364, %v360
    %v369 = vld [vmem:[#allocation4] sm:$0xf]
    %v370 = vld [vmem:[#allocation4 + $0x4] sm:$0xf]
    %v371 = vld [vmem:[#allocation4 + $0x8] sm:$0xf]
    %v372 = vld [vmem:[#allocation4 + $0xc] sm:$0xf]
    %v373 = vld [vmem:[#allocation4 + $0x10] sm:$0xf]
    %v374 = vld [vmem:[#allocation4 + $0x14] sm:$0xf]
    %v375 = vld [vmem:[#allocation4 + $0x18] sm:$0xf]
    %v376 = vld [vmem:[#allocation4 + $0x1c] sm:$0xf]
    %v377 = vld [vmem:[#allocation4 + $0x20] sm:$0xf]
    %v378 = vld [vmem:[#allocation4 + $0x24] sm:$0xf]
    %v379 = vld [vmem:[#allocation4 + $0x28] sm:$0xf]
    %v380 = vld [vmem:[#allocation4 + $0x2c] sm:$0xf]
    %v381 = vld [vmem:[#allocation4 + $0x30] sm:$0xf]
    %v382 = vld [vmem:[#allocation4 + $0x34] sm:$0xf]
    %v383 = vld [vmem:[#allocation4 + $0x38] sm:$0xf]
    %v384 = vld [vmem:[#allocation4 + $0x3c] sm:$0xf]
    %v385 = vld [vmem:[#allocation4 + $0x40] sm:$0xf]
    %v386 = vld [vmem:[#allocation4 + $0x44] sm:$0xf]
    %v387 = vld [vmem:[#allocation4 + $0x48] sm:$0xf]
    %v388 = vld [vmem:[#allocation4 + $0x4c] sm:$0xf]
    %v389 = vld [vmem:[#allocation4 + $0x50] sm:$0xf]
    %v390 = vld [vmem:[#allocation4 + $0x54] sm:$0xf]
    %v391 = vld [vmem:[#allocation4 + $0x58] sm:$0xf]
    %v392 = vld [vmem:[#allocation4 + $0x5c] sm:$0xf]
    %v393 = vld [vmem:[#allocation4 + $0x60] sm:$0xf]
    %v394 = vld [vmem:[#allocation4 + $0x64] sm:$0xf]
    %v395 = vld [vmem:[#allocation4 + $0x68] sm:$0xf]
    %v396 = vld [vmem:[#allocation4 + $0x6c] sm:$0xf]
    %v397 = vld [vmem:[#allocation4 + $0x70] sm:$0xf]
    %v398 = vld [vmem:[#allocation4 + $0x74] sm:$0xf]
    %v399 = vld [vmem:[#allocation4 + $0x78] sm:$0xf]
    %v400 = vld [vmem:[#allocation4 + $0x7c] sm:$0xf]
    %v401 = vld [vmem:[#allocation4 + $0x80] sm:$0xf]
    %v402 = vld [vmem:[#allocation4 + $0x84] sm:$0xf]
    %v403 = vld [vmem:[#allocation4 + $0x88] sm:$0xf]
    %v404 = vld [vmem:[#allocation4 + $0x8c] sm:$0xf]
    %v405 = vld [vmem:[#allocation4 + $0x90] sm:$0xf]
    %v406 = vld [vmem:[#allocation4 + $0x94] sm:$0xf]
    %v407 = vld [vmem:[#allocation4 + $0x98] sm:$0xf]
    %v408 = vld [vmem:[#allocation4 + $0x9c] sm:$0xf]
    %v409 = vld [vmem:[#allocation4 + $0xa0] sm:$0xf]
    %v410 = vld [vmem:[#allocation4 + $0xa4] sm:$0xf]
    %v411 = vld [vmem:[#allocation4 + $0xa8] sm:$0xf]
    %v412 = vld [vmem:[#allocation4 + $0xac] sm:$0xf]
    %v413 = vld [vmem:[#allocation4 + $0xb0] sm:$0xf]
    %v414 = vld [vmem:[#allocation4 + $0xb4] sm:$0xf]
    %v415 = vld [vmem:[#allocation4 + $0xb8] sm:$0xf]
    %v416 = vld [vmem:[#allocation4 + $0xbc] sm:$0xf]
    %v417 = vld [vmem:[#allocation4 + $0xc0] sm:$0xf]
    %v418 = vld [vmem:[#allocation4 + $0xc4] sm:$0xf]
    %v419 = vld [vmem:[#allocation4 + $0xc8] sm:$0xf]
    %v420 = vld [vmem:[#allocation4 + $0xcc] sm:$0xf]
    %v421 = vld [vmem:[#allocation4 + $0xd0] sm:$0xf]
    %v422 = vld [vmem:[#allocation4 + $0xd4] sm:$0xf]
    %v423 = vld [vmem:[#allocation4 + $0xd8] sm:$0xf]
    %v424 = vld [vmem:[#allocation4 + $0xdc] sm:$0xf]
    %v425 = vld [vmem:[#allocation4 + $0xe0] sm:$0xf]
    %v426 = vld [vmem:[#allocation4 + $0xe4] sm:$0xf]
    %v427 = vld [vmem:[#allocation4 + $0xe8] sm:$0xf]
    %v428 = vld [vmem:[#allocation4 + $0xec] sm:$0xf]
    %v429 = vld [vmem:[#allocation4 + $0xf0] sm:$0xf]
    %v430 = vld [vmem:[#allocation4 + $0xf4] sm:$0xf]
    %v431 = vld [vmem:[#allocation4 + $0xf8] sm:$0xf]
    %v432 = vld [vmem:[#allocation4 + $0xfc] sm:$0xf]
    %v433 = vld [vmem:[%s4] sm:$0x1]
    %v435 = vlaneseq
    %v436 = vshrl.u32 %v435, 7
    %v437 = vsub.s32 0, %v436
    %v438 = vrot.slane %v433, %v437
    %v504 = vunpack.c.l.b16 %v369
    %v505 = vunpack.c.l.b16 %v370
    %v506 = vunpack.c.l.b16 %v371
    %v507 = vunpack.c.l.b16 %v372
    %v508 = vunpack.c.l.b16 %v373
    %v509 = vunpack.c.l.b16 %v374
    %v510 = vunpack.c.l.b16 %v375
    %v511 = vunpack.c.l.b16 %v376
    %v512 = vunpack.c.l.b16 %v377
    %v513 = vunpack.c.l.b16 %v378
    %v514 = vunpack.c.l.b16 %v379
    %v515 = vunpack.c.l.b16 %v380
    %v516 = vunpack.c.l.b16 %v381
    %v517 = vunpack.c.l.b16 %v382
    %v518 = vunpack.c.l.b16 %v383
    %v519 = vunpack.c.l.b16 %v384
    %v520 = vunpack.c.l.b16 %v385
    %v521 = vunpack.c.l.b16 %v386
    %v522 = vunpack.c.l.b16 %v387
    %v523 = vunpack.c.l.b16 %v388
    %v524 = vunpack.c.l.b16 %v389
    %v525 = vunpack.c.l.b16 %v390
    %v526 = vunpack.c.l.b16 %v391
    %v527 = vunpack.c.l.b16 %v392
    %v528 = vunpack.c.l.b16 %v393
    %v529 = vunpack.c.l.b16 %v394
    %v530 = vunpack.c.l.b16 %v395
    %v531 = vunpack.c.l.b16 %v396
    %v532 = vunpack.c.l.b16 %v397
    %v533 = vunpack.c.l.b16 %v398
    %v534 = vunpack.c.l.b16 %v399
    %v535 = vunpack.c.l.b16 %v400
    %v536 = vunpack.c.l.b16 %v401
    %v537 = vunpack.c.l.b16 %v402
    %v538 = vunpack.c.l.b16 %v403
    %v539 = vunpack.c.l.b16 %v404
    %v540 = vunpack.c.l.b16 %v405
    %v541 = vunpack.c.l.b16 %v406
    %v542 = vunpack.c.l.b16 %v407
    %v543 = vunpack.c.l.b16 %v408
    %v544 = vunpack.c.l.b16 %v409
    %v545 = vunpack.c.l.b16 %v410
    %v546 = vunpack.c.l.b16 %v411
    %v547 = vunpack.c.l.b16 %v412
    %v548 = vunpack.c.l.b16 %v413
    %v549 = vunpack.c.l.b16 %v414
    %v550 = vunpack.c.l.b16 %v415
    %v551 = vunpack.c.l.b16 %v416
    %v552 = vunpack.c.l.b16 %v417
    %v553 = vunpack.c.l.b16 %v418
    %v554 = vunpack.c.l.b16 %v419
    %v555 = vunpack.c.l.b16 %v420
    %v556 = vunpack.c.l.b16 %v421
    %v557 = vunpack.c.l.b16 %v422
    %v558 = vunpack.c.l.b16 %v423
    %v559 = vunpack.c.l.b16 %v424
    %v560 = vunpack.c.l.b16 %v425
    %v561 = vunpack.c.l.b16 %v426
    %v562 = vunpack.c.l.b16 %v427
    %v563 = vunpack.c.l.b16 %v428
    %v564 = vunpack.c.l.b16 %v429
    %v565 = vunpack.c.l.b16 %v430
    %v566 = vunpack.c.l.b16 %v431
    %v567 = vunpack.c.l.b16 %v432
    %v568 = vpack.c.b16 %v505, %v504
    %v569 = vpack.c.b16 %v507, %v506
    %v570 = vpack.c.b16 %v509, %v508
    %v571 = vpack.c.b16 %v511, %v510
    %v572 = vpack.c.b16 %v513, %v512
    %v573 = vpack.c.b16 %v515, %v514
    %v574 = vpack.c.b16 %v517, %v516
    %v575 = vpack.c.b16 %v519, %v518
    %v576 = vpack.c.b16 %v521, %v520
    %v577 = vpack.c.b16 %v523, %v522
    %v578 = vpack.c.b16 %v525, %v524
    %v579 = vpack.c.b16 %v527, %v526
    %v580 = vpack.c.b16 %v529, %v528
    %v581 = vpack.c.b16 %v531, %v530
    %v582 = vpack.c.b16 %v533, %v532
    %v583 = vpack.c.b16 %v535, %v534
    %v584 = vpack.c.b16 %v537, %v536
    %v585 = vpack.c.b16 %v539, %v538
    %v586 = vpack.c.b16 %v541, %v540
    %v587 = vpack.c.b16 %v543, %v542
    %v588 = vpack.c.b16 %v545, %v544
    %v589 = vpack.c.b16 %v547, %v546
    %v590 = vpack.c.b16 %v549, %v548
    %v591 = vpack.c.b16 %v551, %v550
    %v592 = vpack.c.b16 %v553, %v552
    %v593 = vpack.c.b16 %v555, %v554
    %v594 = vpack.c.b16 %v557, %v556
    %v595 = vpack.c.b16 %v559, %v558
    %v596 = vpack.c.b16 %v561, %v560
    %v597 = vpack.c.b16 %v563, %v562
    %v598 = vpack.c.b16 %v565, %v564
    %v599 = vpack.c.b16 %v567, %v566
    %632 = vmatprep.subr.bf16.mxu0 0
    %633 = vmatpush1.bf16.msra.mxu0 %v568
    %634 = vmatprep.subr.bf16.mxu0 0
    %635 = vmatpush1.bf16.msra.mxu0 %v569
    %636 = vmatprep.subr.bf16.mxu0 0
    %637 = vmatpush1.bf16.msra.mxu0 %v570
    %638 = vmatprep.subr.bf16.mxu0 0
    %639 = vmatpush1.bf16.msra.mxu0 %v571
    %640 = vmatprep.subr.bf16.mxu0 0
    %641 = vmatpush1.bf16.msra.mxu0 %v572
    %642 = vmatprep.subr.bf16.mxu0 0
    %643 = vmatpush1.bf16.msra.mxu0 %v573
    %644 = vmatprep.subr.bf16.mxu0 0
    %645 = vmatpush1.bf16.msra.mxu0 %v574
    %646 = vmatprep.subr.bf16.mxu0 0
    %647 = vmatpush1.bf16.msra.mxu0 %v575
    %648 = vmatprep.subr.bf16.mxu0 0
    %649 = vmatpush1.bf16.msra.mxu0 %v576
    %650 = vmatprep.subr.bf16.mxu0 0
    %651 = vmatpush1.bf16.msra.mxu0 %v577
    %652 = vmatprep.subr.bf16.mxu0 0
    %653 = vmatpush1.bf16.msra.mxu0 %v578
    %654 = vmatprep.subr.bf16.mxu0 0
    %655 = vmatpush1.bf16.msra.mxu0 %v579
    %656 = vmatprep.subr.bf16.mxu0 0
    %657 = vmatpush1.bf16.msra.mxu0 %v580
    %658 = vmatprep.subr.bf16.mxu0 0
    %659 = vmatpush1.bf16.msra.mxu0 %v581
    %660 = vmatprep.subr.bf16.mxu0 0
    %661 = vmatpush1.bf16.msra.mxu0 %v582
    %662 = vmatprep.subr.bf16.mxu0 0
    %663 = vmatpush1.bf16.msra.mxu0 %v583
    %664 = vmatprep.mubr.bf16.mxu0 %v366
    %665 = vmatmul.mubr.bf16.gmra.mrb[0].mxu0 %v365
    %v666 = vpop.f32.mrb[0].mxu0
    %v667 = vadd.f32 %v438, %v666
    %v668 = vpop.f32.mrb[0].mxu0
    %v669 = vpop.f32.mrb[0].mxu0
    %v670 = vadd.f32 %v438, %v669
    %v671 = vpop.f32.mrb[0].mxu0
    %672 = vdwg.mxu0
    %673 = vmatprep.subr.bf16.mxu0 0
    %674 = vmatpush1.bf16.msra.mxu0 %v584
    %675 = vmatprep.subr.bf16.mxu0 0
    %676 = vmatpush1.bf16.msra.mxu0 %v585
    %677 = vmatprep.subr.bf16.mxu0 0
    %678 = vmatpush1.bf16.msra.mxu0 %v586
    %679 = vmatprep.subr.bf16.mxu0 0
    %680 = vmatpush1.bf16.msra.mxu0 %v587
    %681 = vmatprep.subr.bf16.mxu0 0
    %682 = vmatpush1.bf16.msra.mxu0 %v588
    %683 = vmatprep.subr.bf16.mxu0 0
    %684 = vmatpush1.bf16.msra.mxu0 %v589
    %685 = vmatprep.subr.bf16.mxu0 0
    %686 = vmatpush1.bf16.msra.mxu0 %v590
    %687 = vmatprep.subr.bf16.mxu0 0
    %688 = vmatpush1.bf16.msra.mxu0 %v591
    %689 = vmatprep.subr.bf16.mxu0 0
    %690 = vmatpush1.bf16.msra.mxu0 %v592
    %691 = vmatprep.subr.bf16.mxu0 0
    %692 = vmatpush1.bf16.msra.mxu0 %v593
    %693 = vmatprep.subr.bf16.mxu0 0
    %694 = vmatpush1.bf16.msra.mxu0 %v594
    %695 = vmatprep.subr.bf16.mxu0 0
    %696 = vmatpush1.bf16.msra.mxu0 %v595
    %697 = vmatprep.subr.bf16.mxu0 0
    %698 = vmatpush1.bf16.msra.mxu0 %v596
    %699 = vmatprep.subr.bf16.mxu0 0
    %700 = vmatpush1.bf16.msra.mxu0 %v597
    %701 = vmatprep.subr.bf16.mxu0 0
    %702 = vmatpush1.bf16.msra.mxu0 %v598
    %703 = vmatprep.subr.bf16.mxu0 0
    %704 = vmatpush1.bf16.msra.mxu0 %v599
    %705 = vmatprep.mubr.bf16.mxu0 %v368
    %706 = vmatmul.mubr.bf16.gmra.mrb[0].mxu0 %v367
    %v707 = vpop.f32.mrb[0].mxu0
    %v708 = vadd.f32 %v667, %v707
    %v709 = vpop.f32.mrb[0].mxu0
    %v710 = vpop.f32.mrb[0].mxu0
    %v711 = vadd.f32 %v670, %v710
    %v712 = vpop.f32.mrb[0].mxu0
    %713 = vdwg.mxu0
    %714 = vst [vmem:[%s5] sm:$0xff] %v708
    %715 = vst [vmem:[%s5 + $0x8] sm:$0xff] %v711
    // Predicated region
    $region30: #{decoder_forward.1} parent=1 // pred_check
      _
    $region31: #{decoder_forward.1} parent=1 // pred_check_branch
      %717 = sbr.rel (0) target = $region33
    $region32: #{decoder_forward.1} parent=1 // pred_region
      _
    $region33: #{decoder_forward.1} parent=1 // pred_fallthru
      _
    // Predicated region
    $region34: #{decoder_forward.1} parent=1 // pred_check
      _
    $region35: #{decoder_forward.1} parent=1 // pred_check_branch
      %719 = sbr.rel (0) target = $region37
    $region36: #{decoder_forward.1} parent=1 // pred_region
      _
    $region37: #{decoder_forward.1} parent=1 // pred_fallthru
      _
    %720 = vsyncpa [#allocation3], 1
    %721 = vsyncpa [#allocation5], 1

</llo_original>
